<compile_context>
chip_gen: v5e
topology: v5e:2x2
jax: 0.10.0
libtpu: 0.0.40
codegen_flags: <defaults>
</compile_context>

<pallas_src>
import jax
import jax.numpy as jnp
from jax.experimental import pallas as pl
from jax.experimental.pallas import tpu as pltpu


def _qnet_kernel(x_ref, w1_ref, b1_ref, w2_ref, b2_ref, o_ref):
    # hidden = relu(x @ W1 + b1)        x: (TB, I)  W1: (I, H)  b1: (1, H)
    h = jnp.dot(x_ref[...], w1_ref[...], preferred_element_type=jnp.float32)
    h = jnp.maximum(h + b1_ref[...], 0.0)
    # out = hidden @ W2 + b2            W2: (H, O)  b2: (1, O)
    y = jnp.dot(h, w2_ref[...], preferred_element_type=jnp.float32)
    o_ref[...] = (y + b2_ref[...]).astype(o_ref.dtype)


def _round_up(n, m):
    return ((n + m - 1) // m) * m


def linear_qnet_forward(x, w1_t, b1, w2_t, b2, *, block_b=2048):
    """Forward pass of Linear_QNet.

    x    : (B, I)  float32
    w1_t : (I, H)  float32   (pre-transposed: in x out)
    b1   : (1, H)  float32
    w2_t : (H, O)  float32
    b2   : (1, O)  float32
    Returns (B, O) float32.
    """
    B, I = x.shape
    H = w1_t.shape[1]
    O = w2_t.shape[1]

    # --- pad batch only to a sublane multiple (8); last block may be ragged --
    B_pad = _round_up(B, 8)
    if B_pad != B:
        x = jnp.pad(x, ((0, B_pad - B), (0, 0)))

    # --- batch tile: multiple of 8, capped at block_b and at B_pad ----------
    TB = min(_round_up(block_b, 8), B_pad)
    # Keep >= 2 grid steps when there is enough work, so the "parallel" batch
    # axis shards across both TensorCores on v7x.
    if B_pad >= 16:
        TB = min(TB, _round_up(pl.cdiv(B_pad, 2), 8))
    grid = (pl.cdiv(B_pad, TB),)

    flops = 2 * B_pad * (I * H + H * O)
    bytes_accessed = 4 * (B_pad * I + I * H + H + H * O + O + B_pad * O)

    out_padded = pl.pallas_call(
        _qnet_kernel,
        out_shape=jax.ShapeDtypeStruct((B_pad, O), x.dtype),
        grid=grid,
        in_specs=[
            pl.BlockSpec((TB, I), lambda i: (i, 0)),   # x tile (streamed)
            pl.BlockSpec((I, H), lambda i: (0, 0)),    # W1 (resident)
            pl.BlockSpec((1, H), lambda i: (0, 0)),    # b1 (resident)
            pl.BlockSpec((H, O), lambda i: (0, 0)),    # W2 (resident)
            pl.BlockSpec((1, O), lambda i: (0, 0)),    # b2 (resident)
        ],
        out_specs=pl.BlockSpec((TB, O), lambda i: (i, 0)),
        compiler_params=pltpu.CompilerParams(
            dimension_semantics=("parallel",),
        ),
        cost_estimate=pl.CostEstimate(
            flops=flops,
            transcendentals=0,
            bytes_accessed=bytes_accessed,
        ),
    )(x, w1_t, b1, w2_t, b2)

    return out_padded[:B]


def init_params(key, input_size, hidden_size, output_size):
    """Deterministic init matching PyTorch nn.Linear's U(-1/sqrt(fan_in), 1/sqrt(fan_in))."""
    k1, k2, k3, k4 = jax.random.split(key, 4)
    bound1 = 1.0 / (input_size ** 0.5)
    bound2 = 1.0 / (hidden_size ** 0.5)
    # Stored already transposed: (in, out)
    w1_t = jax.random.uniform(k1, (input_size, hidden_size), jnp.float32, -bound1, bound1)
    b1 = jax.random.uniform(k2, (1, hidden_size), jnp.float32, -bound1, bound1)
    w2_t = jax.random.uniform(k3, (hidden_size, output_size), jnp.float32, -bound2, bound2)
    b2 = jax.random.uniform(k4, (1, output_size), jnp.float32, -bound2, bound2)
    return w1_t, b1, w2_t, b2


if __name__ == "__main__":
    input_size, hidden_size, output_size = 16, 32, 4
    batch = 2

    key = jax.random.PRNGKey(0)
    kx, kp = jax.random.split(key)
    x = jax.random.normal(kx, (batch, input_size), jnp.float32)
    w1_t, b1, w2_t, b2 = init_params(kp, input_size, hidden_size, output_size)

    out = linear_qnet_forward(x, w1_t, b1, w2_t, b2)
    out = jax.block_until_ready(out)

    # Reference check in plain JAX
    ref = jnp.maximum(x @ w1_t + b1, 0.0) @ w2_t + b2
    assert out.shape == (batch, output_size)
    assert jnp.allclose(out, ref, atol=1e-5, rtol=1e-5)

    # Larger batch: non-multiple of 8 and of the tile -> exercises the
    # 8-sublane pad, the 2-step grid split, and the ragged last block.
    big_b = 1024 + 43
    xb = jax.random.normal(kx, (big_b, input_size), jnp.float32)
    outb = jax.block_until_ready(linear_qnet_forward(xb, w1_t, b1, w2_t, b2))
    refb = jnp.maximum(xb @ w1_t + b1, 0.0) @ w2_t + b2
    assert outb.shape == (big_b, output_size)
    assert jnp.allclose(outb, refb, atol=1e-5, rtol=1e-5)

    # Small-tile path (multiple full grid steps) for extra coverage.
    outc = jax.block_until_ready(
        linear_qnet_forward(xb, w1_t, b1, w2_t, b2, block_b=128))
    assert jnp.allclose(outc, refb, atol=1e-5, rtol=1e-5)

    print("KERNEL_OK")
</pallas_src>

<mosaic_0001>
module attributes {stable_mosaic.version = 11 : i64} {
  func.func @_qnet_kernel(%arg0: i32, %arg1: memref<8x16xf32, #tpu.memory_space<vmem>>, %arg2: memref<16x32xf32, #tpu.memory_space<vmem>>, %arg3: memref<1x32xf32, #tpu.memory_space<vmem>>, %arg4: memref<32x4xf32, #tpu.memory_space<vmem>>, %arg5: memref<1x4xf32, #tpu.memory_space<vmem>>, %arg6: memref<8x4xf32, #tpu.memory_space<vmem>>) attributes {dimension_semantics = [#tpu.dimension_semantics<parallel>], iteration_bounds = array<i64: 1>, scalar_prefetch = 0 : i64, scratch_operands = 0 : i64, tpu.core_type = #tpu.core_type<tc>, window_params = [{transform_indices = @transform_0, window_bounds = array<i64: 8, 16>}, {pipeline_mode = #tpu.pipeline_mode<synchronous>, transform_indices = @transform_1, window_bounds = array<i64: 16, 32>}, {pipeline_mode = #tpu.pipeline_mode<synchronous>, transform_indices = @transform_2, window_bounds = array<i64: 1, 32>}, {pipeline_mode = #tpu.pipeline_mode<synchronous>, transform_indices = @transform_3, window_bounds = array<i64: 32, 4>}, {pipeline_mode = #tpu.pipeline_mode<synchronous>, transform_indices = @transform_4, window_bounds = array<i64: 1, 4>}, {transform_indices = @transform_5, window_bounds = array<i64: 8, 4>}]} {
    %c0 = arith.constant 0 : index
    %c0_0 = arith.constant 0 : index
    %0 = vector.load %arg1[%c0, %c0_0] : memref<8x16xf32, #tpu.memory_space<vmem>>, vector<8x16xf32>
    %c0_1 = arith.constant 0 : index
    %c0_2 = arith.constant 0 : index
    %1 = vector.load %arg2[%c0_1, %c0_2] : memref<16x32xf32, #tpu.memory_space<vmem>>, vector<16x32xf32>
    %cst = arith.constant dense<0.000000e+00> : vector<8x32xf32>
    %2 = tpu.matmul %0, %1, %cst {dimension_numbers = #tpu.dot_dimension_numbers<[1], [0], [0], [1], [0, 0, 1, 1], [], []>} : vector<8x16xf32>, vector<16x32xf32>, vector<8x32xf32> -> vector<8x32xf32>
    %c0_3 = arith.constant 0 : index
    %c0_4 = arith.constant 0 : index
    %3 = vector.load %arg3[%c0_3, %c0_4] : memref<1x32xf32, #tpu.memory_space<vmem>>, vector<1x32xf32>
    %4 = vector.broadcast %3 : vector<1x32xf32> to vector<8x32xf32>
    %5 = arith.addf %2, %4 : vector<8x32xf32>
    %cst_5 = arith.constant 0.000000e+00 : f32
    %6 = vector.broadcast %cst_5 : f32 to vector<8x32xf32>
    %7 = arith.maximumf %5, %6 : vector<8x32xf32>
    %c0_6 = arith.constant 0 : index
    %c0_7 = arith.constant 0 : index
    %8 = vector.load %arg4[%c0_6, %c0_7] : memref<32x4xf32, #tpu.memory_space<vmem>>, vector<32x4xf32>
    %cst_8 = arith.constant dense<0.000000e+00> : vector<8x4xf32>
    %9 = tpu.matmul %7, %8, %cst_8 {dimension_numbers = #tpu.dot_dimension_numbers<[1], [0], [0], [1], [0, 0, 1, 1], [], []>} : vector<8x32xf32>, vector<32x4xf32>, vector<8x4xf32> -> vector<8x4xf32>
    %c0_9 = arith.constant 0 : index
    %c0_10 = arith.constant 0 : index
    %10 = vector.load %arg5[%c0_9, %c0_10] : memref<1x4xf32, #tpu.memory_space<vmem>>, vector<1x4xf32>
    %11 = vector.broadcast %10 : vector<1x4xf32> to vector<8x4xf32>
    %12 = arith.addf %9, %11 : vector<8x4xf32>
    %c0_11 = arith.constant 0 : index
    %c0_12 = arith.constant 0 : index
    %13 = vector.load %arg6[%c0_11, %c0_12] : memref<8x4xf32, #tpu.memory_space<vmem>>, vector<8x4xf32>
    tpu.vector_store %arg6[%c0_11, %c0_12], %12 {strides = array<i32>} : memref<8x4xf32, #tpu.memory_space<vmem>>, vector<8x4xf32>,
    return
  }
  func.func @transform_0(%arg0: i32) -> (i32, i32) {
    %c0_i32 = arith.constant 0 : i32
    %c0_i32_0 = arith.constant 0 : i32
    return %arg0, %c0_i32 : i32, i32
  }
  func.func @transform_1(%arg0: i32) -> (i32, i32) {
    %c0_i32 = arith.constant 0 : i32
    %c0_i32_0 = arith.constant 0 : i32
    %c0_i32_1 = arith.constant 0 : i32
    return %c0_i32, %c0_i32_0 : i32, i32
  }
  func.func @transform_2(%arg0: i32) -> (i32, i32) {
    %c0_i32 = arith.constant 0 : i32
    %c0_i32_0 = arith.constant 0 : i32
    %c0_i32_1 = arith.constant 0 : i32
    return %c0_i32, %c0_i32_0 : i32, i32
  }
  func.func @transform_3(%arg0: i32) -> (i32, i32) {
    %c0_i32 = arith.constant 0 : i32
    %c0_i32_0 = arith.constant 0 : i32
    %c0_i32_1 = arith.constant 0 : i32
    return %c0_i32, %c0_i32_0 : i32, i32
  }
  func.func @transform_4(%arg0: i32) -> (i32, i32) {
    %c0_i32 = arith.constant 0 : i32
    %c0_i32_0 = arith.constant 0 : i32
    %c0_i32_1 = arith.constant 0 : i32
    return %c0_i32, %c0_i32_0 : i32, i32
  }
  func.func @transform_5(%arg0: i32) -> (i32, i32) {
    %c0_i32 = arith.constant 0 : i32
    %c0_i32_0 = arith.constant 0 : i32
    return %arg0, %c0_i32 : i32, i32
  }
}

</mosaic_0001>

<llo_original>
// kernel: tpu_custom_call.1
$region0: #{tpu_custom_call.1}
  #allocation0 [shape = 'u32[]', space=smem, size = 0x4, offset = 0x4, fixed_abs, tag = 'smem constant byte address 0x4 - core index']
  #allocation1 [shape = 'u32[72,128]{1,0:T(1,128)}', space=vmem, size = 0x9000, scoped, tag = 'internal scratch']
  %s0 = inlined_call_operand.vmem [shape: f32[8,16], index: 0, kind: input, shape index: {}]
  %s1 = inlined_call_operand.vmem [shape: f32[16,32], index: 1, kind: input, shape index: {}]
  %s2 = inlined_call_operand.vmem [shape: f32[1,32], index: 2, kind: input, shape index: {}]
  %s3 = inlined_call_operand.vmem [shape: f32[32,4], index: 3, kind: input, shape index: {}]
  %s4 = inlined_call_operand.vmem [shape: f32[1,4], index: 4, kind: input, shape index: {}]
  %s5 = inlined_call_operand.vmem [shape: f32[8,4], index: 5, kind: output, shape index: {}]
  %s6 = sld [smem:[#allocation0]]
  $region30: #{tpu_custom_call.1} parent=0
    _
  %s8 = ssub.s32 1, %s6
  %s9 = scalar_select 0, %s8, %s6
  // Predicated region
  $region2: #{tpu_custom_call.1} parent=0 // pred_check
    _
  $region3: #{tpu_custom_call.1} parent=0 // pred_check_branch
    %11 = sbr.rel (0) target = $region5
  $region4: #{tpu_custom_call.1} parent=0 // pred_region
    _
  $region5: #{tpu_custom_call.1} parent=0 // pred_fallthru
    _
  // Predicated region
  $region6: #{tpu_custom_call.1} parent=0 // pred_check
    _
  $region7: #{tpu_custom_call.1} parent=0 // pred_check_branch
    %13 = sbr.rel (0) target = $region9
  $region8: #{tpu_custom_call.1} parent=0 // pred_region
    _
  $region9: #{tpu_custom_call.1} parent=0 // pred_fallthru
    _
  // Predicated region
  $region10: #{tpu_custom_call.1} parent=0 // pred_check
    _
  $region11: #{tpu_custom_call.1} parent=0 // pred_check_branch
    %15 = sbr.rel (0) target = $region13
  $region12: #{tpu_custom_call.1} parent=0 // pred_region
    _
  $region13: #{tpu_custom_call.1} parent=0 // pred_fallthru
    _
  // Predicated region
  $region14: #{tpu_custom_call.1} parent=0 // pred_check
    _
  $region15: #{tpu_custom_call.1} parent=0 // pred_check_branch
    %17 = sbr.rel (0) target = $region17
  $region16: #{tpu_custom_call.1} parent=0 // pred_region
    _
  $region17: #{tpu_custom_call.1} parent=0 // pred_fallthru
    _
  // Predicated region
  $region18: #{tpu_custom_call.1} parent=0 // pred_check
    _
  $region19: #{tpu_custom_call.1} parent=0 // pred_check_branch
    %19 = sbr.rel (0) target = $region21
  $region20: #{tpu_custom_call.1} parent=0 // pred_region
    _
  $region21: #{tpu_custom_call.1} parent=0 // pred_fallthru
    _
  %v20 = vld [vmem:[%s0] sm:$0xff]
  %v21 = vld [vmem:[%s1] sm:$0xff]
  %v22 = vld [vmem:[%s1 + $0x8] sm:$0xff]
  %v23 = vld [vmem:[%s2] sm:$0x1]
  %v25 = vperm.slane %v23, 0
  %vm27 = vcmask 130048
  %v29 = vsel %vm27, %v20, 0
  %31 = vmatpush.msra.mxu0 0.0
  %32 = vmatpush.msra.mxu0 0.0
  %33 = vmatpush.msra.mxu0 0.0
  %34 = vmatpush.msra.mxu0 0.0
  %35 = vmatpush.msra.mxu0 0.0
  %36 = vmatpush.msra.mxu0 0.0
  %37 = vmatpush.msra.mxu0 0.0
  %38 = vmatpush.msra.mxu0 0.0
  %39 = vmatpush.msra.mxu0 0.0
  %40 = vmatpush.msra.mxu0 0.0
  %41 = vmatpush.msra.mxu0 0.0
  %42 = vmatpush.msra.mxu0 0.0
  %43 = vmatpush.msra.mxu0 0.0
  %44 = vmatpush.msra.mxu0 0.0
  %45 = vmatpush.msra.mxu0 %v22
  %46 = vmatpush.msra.mxu0 %v21
  %47 = vmatmul.f32.gmra.mxu0 %v29
  %v48 = vpop.f32.mrf.mxu0
  %v49 = vadd.f32 %v25, %v48
  %50 = vdwg.mxu0
  %v51 = vmax.f32 %v49, 0.0
  %v52 = vld [vmem:[%s3] sm:$0xff]
  %v53 = vld [vmem:[%s3 + $0x8] sm:$0xff]
  %v54 = vld [vmem:[%s3 + $0x10] sm:$0xff]
  %v55 = vld [vmem:[%s3 + $0x18] sm:$0xff]
  %v56 = vld [vmem:[%s4] sm:$0x1]
  %v58 = vperm.slane %v56, 0
  %vm60 = vcmask 261120
  %v62 = vsel %vm60, %v51, 0
  %64 = vmatpush.msra.mxu0 0.0
  %65 = vmatpush.msra.mxu0 0.0
  %66 = vmatpush.msra.mxu0 0.0
  %67 = vmatpush.msra.mxu0 0.0
  %68 = vmatpush.msra.mxu0 0.0
  %69 = vmatpush.msra.mxu0 0.0
  %70 = vmatpush.msra.mxu0 0.0
  %71 = vmatpush.msra.mxu0 0.0
  %72 = vmatpush.msra.mxu0 0.0
  %73 = vmatpush.msra.mxu0 0.0
  %74 = vmatpush.msra.mxu0 0.0
  %75 = vmatpush.msra.mxu0 0.0
  %76 = vmatpush.msra.mxu0 %v55
  %77 = vmatpush.msra.mxu0 %v54
  %78 = vmatpush.msra.mxu0 %v53
  %79 = vmatpush.msra.mxu0 %v52
  %80 = vmatmul.f32.gmra.mxu0 %v62
  %v81 = vpop.f32.mrf.mxu0
  %v82 = vadd.f32 %v58, %v81
  %83 = vdwg.mxu0
  %vm84 = vcmask 31744
  %85 = vst.msk [vmem:[%s5] sm:$0xff] %vm84, %v82
  // Predicated region
  $region22: #{tpu_custom_call.1} parent=0 // pred_check
    _
  $region23: #{tpu_custom_call.1} parent=0 // pred_check_branch
    %87 = sbr.rel (0) target = $region25
  $region24: #{tpu_custom_call.1} parent=0 // pred_region
    _
  $region25: #{tpu_custom_call.1} parent=0 // pred_fallthru
    _
  // Predicated region
  $region26: #{tpu_custom_call.1} parent=0 // pred_check
    _
  $region27: #{tpu_custom_call.1} parent=0 // pred_check_branch
    %89 = sbr.rel (0) target = $region29
  $region28: #{tpu_custom_call.1} parent=0 // pred_region
    _
  $region29: #{tpu_custom_call.1} parent=0 // pred_fallthru
    _

</llo_original>
